<compile_context>
chip_gen: v6e
topology: v6e:2x2x1
jax: 0.10.0
libtpu: 0.0.40
codegen_flags: <defaults>
</compile_context>

<pallas_src>
import math

import jax
import jax.numpy as jnp
from jax.experimental import pallas as pl
from jax.experimental.pallas import tpu as pltpu


def positional_encoder_kernel(x_ref, emb_ref, wl_ref, bl_ref, w1_ref, b1_ref,
                              w2_ref, peb2_ref, o_ref):
    """Grid = (B, N // n_tile). One (batch, node-tile) pair per step."""
    n_tile, C = emb_ref.shape
    T = x_ref.shape[1]

    # h = lin(x): (T, C). Recomputed per node tile (cheap; keeps both grid
    # axes independent / 'parallel' -- no scratch, no pl.when gate).
    h = (jnp.dot(x_ref[0], wl_ref[...], preferred_element_type=jnp.float32)
         + bl_ref[...])

    # Broadcast node embeddings over time, then fuse the node axis into the
    # matmul M dimension: rows ordered (node, time) -> (n_tile*T, C).
    z = h[None, :, :] + emb_ref[...][:, None, :]              # (n_tile, T, C)
    zf = z.reshape(n_tile * T, C)                             # collapse leading dims
    zf = jnp.where(zf >= 0, zf, 0.01 * zf)                    # LeakyReLU(0.01)

    # MLP hidden layer (Linear + ReLU; Dropout(p=0) == identity) and readout
    # Linear as two node-fused MXU matmuls with M = n_tile*T.
    m = jnp.maximum(
        jnp.dot(zf, w1_ref[...], preferred_element_type=jnp.float32)
        + b1_ref[...],
        0.0,
    )
    o = jnp.dot(m, w2_ref[...], preferred_element_type=jnp.float32)

    # Add (pe + b2) and place each node's (T, C) slab into its lane range of
    # the lane-dense (T, n_tile*C) output block. The HBM writeback of the
    # block is full-lane-width dense; with C >= 128 these stores are also
    # lane-aligned and unmasked.
    for n in range(n_tile):
        piece = o[n * T:(n + 1) * T, :] + peb2_ref[...]
        o_ref[0, :, n * C:(n + 1) * C] = piece.astype(o_ref.dtype)


def positional_encoder(x, node_emb, wl, bl, w1, b1, w2, b2, pe, *, n_tile=None):
    B, T, Cin = x.shape
    N, C = node_emb.shape
    if n_tile is None:
        n_tile = N
    assert N % n_tile == 0

    # Fold the readout bias into the (static) positional encoding: one fewer
    # kernel operand and one fewer broadcast-add per step.
    pe_b2 = (pe + b2).astype(jnp.float32)                     # (T, C)

    out_flat = pl.pallas_call(
        positional_encoder_kernel,
        out_shape=jax.ShapeDtypeStruct((B, T, N * C), x.dtype),
        grid_spec=pltpu.PrefetchScalarGridSpec(
            num_scalar_prefetch=0,
            grid=(B, N // n_tile),
            in_specs=[
                pl.BlockSpec((1, T, Cin), lambda b, j: (b, 0, 0)),     # x
                pl.BlockSpec((n_tile, C), lambda b, j: (j, 0)),        # node_emb tile
                pl.BlockSpec((Cin, C), lambda b, j: (0, 0)),           # W_lin
                pl.BlockSpec((1, C), lambda b, j: (0, 0)),             # b_lin
                pl.BlockSpec((C, C), lambda b, j: (0, 0)),             # W1 (mlp hidden)
                pl.BlockSpec((1, C), lambda b, j: (0, 0)),             # b1
                pl.BlockSpec((C, C), lambda b, j: (0, 0)),             # W2 (readout)
                pl.BlockSpec((T, C), lambda b, j: (0, 0)),             # pe + b2
            ],
            # Lane-dense output block: last dim = n_tile*C (128 at toy shapes).
            out_specs=pl.BlockSpec((1, T, n_tile * C), lambda b, j: (b, 0, j)),
        ),
        compiler_params=pltpu.CompilerParams(
            dimension_semantics=("parallel", "parallel"),
            vmem_limit_bytes=32 << 20,   # explicit, safe across v5e/v6e/v7x
        ),
    )(x, node_emb, wl, bl, w1, b1, w2, pe_b2)

    # [B, T, N*C] -> [B, T, N, C] is metadata-only (no transpose, no HBM pass).
    return out_flat.reshape(B, T, N, C)


def make_sinusoidal_pe(T, C):
    position = jnp.arange(T, dtype=jnp.float32)[:, None]                     # (T, 1)
    div_term = jnp.exp(
        jnp.arange(0, C, 2, dtype=jnp.float32) * (-(math.log(10000.0) / C))
    )                                                                         # (C/2,)
    pe_sin = jnp.sin(position * div_term)
    pe_cos = jnp.cos(position * div_term)
    # interleave: pe[:, 0::2] = sin, pe[:, 1::2] = cos
    return jnp.stack([pe_sin, pe_cos], axis=-1).reshape(T, C)


def reference(x, node_emb, wl, bl, w1, b1, w2, b2, pe):
    h = x @ wl + bl                                          # (B, T, C)
    z = h[:, :, None, :] + node_emb[None, None, :, :]        # (B, T, N, C)
    z = jnp.where(z >= 0, z, 0.01 * z)                       # LeakyReLU
    m = jnp.maximum(z @ w1 + b1, 0.0)                        # MLP hidden
    o = m @ w2 + b2                                          # readout
    return o + pe[None, :, None, :]                          # + positional encoding


if __name__ == "__main__":
    # Small shapes: batch=2, steps=8, nodes=4, in_channels=4, out_channels=32
    B, T, N, CIN, C = 2, 8, 4, 4, 32

    key = jax.random.PRNGKey(0)
    kx, ke, kwl, kbl, kw1, kb1, kw2, kb2 = jax.random.split(key, 8)

    x = jax.random.normal(kx, (B, T, CIN), dtype=jnp.float32)

    # Deterministic, PyTorch-style uniform inits (weights stored pre-transposed [in, out]).
    emb_bound = 1.0 / math.sqrt(C)
    node_emb = jax.random.uniform(ke, (N, C), jnp.float32, -emb_bound, emb_bound)

    bl_bound = 1.0 / math.sqrt(CIN)
    wl = jax.random.uniform(kwl, (CIN, C), jnp.float32, -bl_bound, bl_bound)
    bl = jax.random.uniform(kbl, (1, C), jnp.float32, -bl_bound, bl_bound)

    b_bound = 1.0 / math.sqrt(C)
    w1 = jax.random.uniform(kw1, (C, C), jnp.float32, -b_bound, b_bound)
    b1 = jax.random.uniform(kb1, (1, C), jnp.float32, -b_bound, b_bound)
    w2 = jax.random.uniform(kw2, (C, C), jnp.float32, -b_bound, b_bound)
    b2 = jax.random.uniform(kb2, (1, C), jnp.float32, -b_bound, b_bound)

    pe = make_sinusoidal_pe(T, C)

    # TODO(synk): lazy-init path (UninitializedParameter + forward pre-hook) is an
    # init-time mechanism with no runtime compute; parameters are materialized eagerly here.

    out = positional_encoder(x, node_emb, wl, bl, w1, b1, w2, b2, pe)
    out = jax.block_until_ready(out)

    ref = reference(x, node_emb, wl, bl, w1, b1, w2, b2, pe)
    assert out.shape == (B, T, N, C), out.shape
    assert jnp.allclose(out, ref, rtol=1e-5, atol=1e-5), (
        float(jnp.max(jnp.abs(out - ref)))
    )

    print("KERNEL_OK")
</pallas_src>

<mosaic_0001>
module attributes {stable_mosaic.version = 11 : i64} {
  func.func @positional_encoder_kernel(%arg0: i32, %arg1: i32, %arg2: memref<1x8x4xf32, #tpu.memory_space<vmem>>, %arg3: memref<4x32xf32, #tpu.memory_space<vmem>>, %arg4: memref<4x32xf32, #tpu.memory_space<vmem>>, %arg5: memref<1x32xf32, #tpu.memory_space<vmem>>, %arg6: memref<32x32xf32, #tpu.memory_space<vmem>>, %arg7: memref<1x32xf32, #tpu.memory_space<vmem>>, %arg8: memref<32x32xf32, #tpu.memory_space<vmem>>, %arg9: memref<8x32xf32, #tpu.memory_space<vmem>>, %arg10: memref<1x8x128xf32, #tpu.memory_space<vmem>>) attributes {dimension_semantics = [#tpu.dimension_semantics<parallel>, #tpu.dimension_semantics<parallel>], iteration_bounds = array<i64: 2, 1>, scalar_prefetch = 0 : i64, scratch_operands = 0 : i64, tpu.core_type = #tpu.core_type<tc>, window_params = [{transform_indices = @transform_0, window_bounds = array<i64: 1, 8, 4>}, {transform_indices = @transform_1, window_bounds = array<i64: 4, 32>}, {pipeline_mode = #tpu.pipeline_mode<synchronous>, transform_indices = @transform_2, window_bounds = array<i64: 4, 32>}, {pipeline_mode = #tpu.pipeline_mode<synchronous>, transform_indices = @transform_3, window_bounds = array<i64: 1, 32>}, {pipeline_mode = #tpu.pipeline_mode<synchronous>, transform_indices = @transform_4, window_bounds = array<i64: 32, 32>}, {pipeline_mode = #tpu.pipeline_mode<synchronous>, transform_indices = @transform_5, window_bounds = array<i64: 1, 32>}, {pipeline_mode = #tpu.pipeline_mode<synchronous>, transform_indices = @transform_6, window_bounds = array<i64: 32, 32>}, {pipeline_mode = #tpu.pipeline_mode<synchronous>, transform_indices = @transform_7, window_bounds = array<i64: 8, 32>}, {transform_indices = @transform_8, window_bounds = array<i64: 1, 8, 128>}]} {
    %c0 = arith.constant 0 : index
    %c0_0 = arith.constant 0 : index
    %c0_1 = arith.constant 0 : index
    %0 = vector.load %arg2[%c0, %c0_0, %c0_1] : memref<1x8x4xf32, #tpu.memory_space<vmem>>, vector<1x8x4xf32>
    %1 = vector.shape_cast %0 : vector<1x8x4xf32> to vector<8x4xf32>
    %c0_2 = arith.constant 0 : index
    %c0_3 = arith.constant 0 : index
    %2 = vector.load %arg4[%c0_2, %c0_3] : memref<4x32xf32, #tpu.memory_space<vmem>>, vector<4x32xf32>
    %cst = arith.constant dense<0.000000e+00> : vector<8x32xf32>
    %3 = tpu.matmul %1, %2, %cst {dimension_numbers = #tpu.dot_dimension_numbers<[1], [0], [0], [1], [0, 0, 1, 1], [], []>} : vector<8x4xf32>, vector<4x32xf32>, vector<8x32xf32> -> vector<8x32xf32>
    %c0_4 = arith.constant 0 : index
    %c0_5 = arith.constant 0 : index
    %4 = vector.load %arg5[%c0_4, %c0_5] : memref<1x32xf32, #tpu.memory_space<vmem>>, vector<1x32xf32>
    %5 = vector.broadcast %4 : vector<1x32xf32> to vector<8x32xf32>
    %6 = arith.addf %3, %5 : vector<8x32xf32>
    %7 = vector.shape_cast %6 : vector<8x32xf32> to vector<1x8x32xf32>
    %c0_6 = arith.constant 0 : index
    %c0_7 = arith.constant 0 : index
    %8 = vector.load %arg3[%c0_6, %c0_7] : memref<4x32xf32, #tpu.memory_space<vmem>>, vector<4x32xf32>
    %9 = vector.shape_cast %8 : vector<4x32xf32> to vector<4x1x32xf32>
    %10 = vector.broadcast %7 : vector<1x8x32xf32> to vector<4x8x32xf32>
    %11 = vector.broadcast %9 : vector<4x1x32xf32> to vector<4x8x32xf32>
    %12 = arith.addf %10, %11 : vector<4x8x32xf32>
    %13 = vector.shape_cast %12 : vector<4x8x32xf32> to vector<32x32xf32>
    %cst_8 = arith.constant 0.000000e+00 : f32
    %14 = vector.broadcast %cst_8 : f32 to vector<32x32xf32>
    %15 = arith.cmpf oge, %13, %14 : vector<32x32xf32>
    %cst_9 = arith.constant 0.00999999977 : f32
    %16 = vector.broadcast %cst_9 : f32 to vector<32x32xf32>
    %17 = arith.mulf %16, %13 : vector<32x32xf32>
    %18 = arith.select %15, %13, %17 : vector<32x32xi1>, vector<32x32xf32>
    %c0_10 = arith.constant 0 : index
    %c0_11 = arith.constant 0 : index
    %19 = vector.load %arg6[%c0_10, %c0_11] : memref<32x32xf32, #tpu.memory_space<vmem>>, vector<32x32xf32>
    %cst_12 = arith.constant dense<0.000000e+00> : vector<32x32xf32>
    %20 = tpu.matmul %18, %19, %cst_12 {dimension_numbers = #tpu.dot_dimension_numbers<[1], [0], [0], [1], [0, 0, 1, 1], [], []>} : vector<32x32xf32>, vector<32x32xf32>, vector<32x32xf32> -> vector<32x32xf32>
    %c0_13 = arith.constant 0 : index
    %c0_14 = arith.constant 0 : index
    %21 = vector.load %arg7[%c0_13, %c0_14] : memref<1x32xf32, #tpu.memory_space<vmem>>, vector<1x32xf32>
    %22 = vector.broadcast %21 : vector<1x32xf32> to vector<32x32xf32>
    %23 = arith.addf %20, %22 : vector<32x32xf32>
    %cst_15 = arith.constant 0.000000e+00 : f32
    %24 = vector.broadcast %cst_15 : f32 to vector<32x32xf32>
    %25 = arith.maximumf %23, %24 : vector<32x32xf32>
    %c0_16 = arith.constant 0 : index
    %c0_17 = arith.constant 0 : index
    %26 = vector.load %arg8[%c0_16, %c0_17] : memref<32x32xf32, #tpu.memory_space<vmem>>, vector<32x32xf32>
    %cst_18 = arith.constant dense<0.000000e+00> : vector<32x32xf32>
    %27 = tpu.matmul %25, %26, %cst_18 {dimension_numbers = #tpu.dot_dimension_numbers<[1], [0], [0], [1], [0, 0, 1, 1], [], []>} : vector<32x32xf32>, vector<32x32xf32>, vector<32x32xf32> -> vector<32x32xf32>
    %28 = vector.extract_strided_slice %27 {offsets = [0, 0], sizes = [8, 32], strides = [1, 1]} : vector<32x32xf32> to vector<8x32xf32>
    %c0_19 = arith.constant 0 : index
    %c0_20 = arith.constant 0 : index
    %29 = vector.load %arg9[%c0_19, %c0_20] : memref<8x32xf32, #tpu.memory_space<vmem>>, vector<8x32xf32>
    %30 = arith.addf %28, %29 : vector<8x32xf32>
    %c0_21 = arith.constant 0 : index
    %c0_22 = arith.constant 0 : index
    %c0_23 = arith.constant 0 : index
    %31 = vector.load %arg10[%c0_21, %c0_22, %c0_23] : memref<1x8x128xf32, #tpu.memory_space<vmem>>, vector<1x8x32xf32>
    %32 = vector.shape_cast %31 : vector<1x8x32xf32> to vector<8x32xf32>
    %33 = vector.shape_cast %30 : vector<8x32xf32> to vector<1x8x32xf32>
    tpu.vector_store %arg10[%c0_21, %c0_22, %c0_23], %33 {strides = array<i32>} : memref<1x8x128xf32, #tpu.memory_space<vmem>>, vector<1x8x32xf32>,
    %34 = vector.extract_strided_slice %27 {offsets = [8, 0], sizes = [8, 32], strides = [1, 1]} : vector<32x32xf32> to vector<8x32xf32>
    %c0_24 = arith.constant 0 : index
    %c0_25 = arith.constant 0 : index
    %35 = vector.load %arg9[%c0_24, %c0_25] : memref<8x32xf32, #tpu.memory_space<vmem>>, vector<8x32xf32>
    %36 = arith.addf %34, %35 : vector<8x32xf32>
    %c0_26 = arith.constant 0 : index
    %c0_27 = arith.constant 0 : index
    %c32 = arith.constant 32 : index
    %37 = vector.load %arg10[%c0_26, %c0_27, %c32] : memref<1x8x128xf32, #tpu.memory_space<vmem>>, vector<1x8x32xf32>
    %38 = vector.shape_cast %37 : vector<1x8x32xf32> to vector<8x32xf32>
    %39 = vector.shape_cast %36 : vector<8x32xf32> to vector<1x8x32xf32>
    tpu.vector_store %arg10[%c0_26, %c0_27, %c32], %39 {strides = array<i32>} : memref<1x8x128xf32, #tpu.memory_space<vmem>>, vector<1x8x32xf32>,
    %40 = vector.extract_strided_slice %27 {offsets = [16, 0], sizes = [8, 32], strides = [1, 1]} : vector<32x32xf32> to vector<8x32xf32>
    %c0_28 = arith.constant 0 : index
    %c0_29 = arith.constant 0 : index
    %41 = vector.load %arg9[%c0_28, %c0_29] : memref<8x32xf32, #tpu.memory_space<vmem>>, vector<8x32xf32>
    %42 = arith.addf %40, %41 : vector<8x32xf32>
    %c0_30 = arith.constant 0 : index
    %c0_31 = arith.constant 0 : index
    %c64 = arith.constant 64 : index
    %43 = vector.load %arg10[%c0_30, %c0_31, %c64] : memref<1x8x128xf32, #tpu.memory_space<vmem>>, vector<1x8x32xf32>
    %44 = vector.shape_cast %43 : vector<1x8x32xf32> to vector<8x32xf32>
    %45 = vector.shape_cast %42 : vector<8x32xf32> to vector<1x8x32xf32>
    tpu.vector_store %arg10[%c0_30, %c0_31, %c64], %45 {strides = array<i32>} : memref<1x8x128xf32, #tpu.memory_space<vmem>>, vector<1x8x32xf32>,
    %46 = vector.extract_strided_slice %27 {offsets = [24, 0], sizes = [8, 32], strides = [1, 1]} : vector<32x32xf32> to vector<8x32xf32>
    %c0_32 = arith.constant 0 : index
    %c0_33 = arith.constant 0 : index
    %47 = vector.load %arg9[%c0_32, %c0_33] : memref<8x32xf32, #tpu.memory_space<vmem>>, vector<8x32xf32>
    %48 = arith.addf %46, %47 : vector<8x32xf32>
    %c0_34 = arith.constant 0 : index
    %c0_35 = arith.constant 0 : index
    %c96 = arith.constant 96 : index
    %49 = vector.load %arg10[%c0_34, %c0_35, %c96] : memref<1x8x128xf32, #tpu.memory_space<vmem>>, vector<1x8x32xf32>
    %50 = vector.shape_cast %49 : vector<1x8x32xf32> to vector<8x32xf32>
    %51 = vector.shape_cast %48 : vector<8x32xf32> to vector<1x8x32xf32>
    tpu.vector_store %arg10[%c0_34, %c0_35, %c96], %51 {strides = array<i32>} : memref<1x8x128xf32, #tpu.memory_space<vmem>>, vector<1x8x32xf32>,
    return
  }
  func.func @transform_0(%arg0: i32, %arg1: i32) -> (i32, i32, i32) {
    %c0_i32 = arith.constant 0 : i32
    %c0_i32_0 = arith.constant 0 : i32
    %c0_i32_1 = arith.constant 0 : i32
    return %arg0, %c0_i32, %c0_i32_0 : i32, i32, i32
  }
  func.func @transform_1(%arg0: i32, %arg1: i32) -> (i32, i32) {
    %c0_i32 = arith.constant 0 : i32
    %c0_i32_0 = arith.constant 0 : i32
    return %arg1, %c0_i32 : i32, i32
  }
  func.func @transform_2(%arg0: i32, %arg1: i32) -> (i32, i32) {
    %c0_i32 = arith.constant 0 : i32
    %c0_i32_0 = arith.constant 0 : i32
    %c0_i32_1 = arith.constant 0 : i32
    return %c0_i32, %c0_i32_0 : i32, i32
  }
  func.func @transform_3(%arg0: i32, %arg1: i32) -> (i32, i32) {
    %c0_i32 = arith.constant 0 : i32
    %c0_i32_0 = arith.constant 0 : i32
    %c0_i32_1 = arith.constant 0 : i32
    return %c0_i32, %c0_i32_0 : i32, i32
  }
  func.func @transform_4(%arg0: i32, %arg1: i32) -> (i32, i32) {
    %c0_i32 = arith.constant 0 : i32
    %c0_i32_0 = arith.constant 0 : i32
    %c0_i32_1 = arith.constant 0 : i32
    return %c0_i32, %c0_i32_0 : i32, i32
  }
  func.func @transform_5(%arg0: i32, %arg1: i32) -> (i32, i32) {
    %c0_i32 = arith.constant 0 : i32
    %c0_i32_0 = arith.constant 0 : i32
    %c0_i32_1 = arith.constant 0 : i32
    return %c0_i32, %c0_i32_0 : i32, i32
  }
  func.func @transform_6(%arg0: i32, %arg1: i32) -> (i32, i32) {
    %c0_i32 = arith.constant 0 : i32
    %c0_i32_0 = arith.constant 0 : i32
    %c0_i32_1 = arith.constant 0 : i32
    return %c0_i32, %c0_i32_0 : i32, i32
  }
  func.func @transform_7(%arg0: i32, %arg1: i32) -> (i32, i32) {
    %c0_i32 = arith.constant 0 : i32
    %c0_i32_0 = arith.constant 0 : i32
    %c0_i32_1 = arith.constant 0 : i32
    return %c0_i32, %c0_i32_0 : i32, i32
  }
  func.func @transform_8(%arg0: i32, %arg1: i32) -> (i32, i32, i32) {
    %c0_i32 = arith.constant 0 : i32
    %c0_i32_0 = arith.constant 0 : i32
    return %arg0, %c0_i32, %arg1 : i32, i32, i32
  }
}

</mosaic_0001>

<llo_original>
// kernel: tpu_custom_call.1
$region0: #{tpu_custom_call.1}
  #allocation0 [shape = 'u32[]', space=smem, size = 0x4, offset = 0x4, fixed_abs, tag = 'smem constant byte address 0x4 - core index']
  #allocation1 [shape = 'u32[144,128]{1,0:T(1,128)}', space=vmem, size = 0x12000, scoped, tag = 'internal scratch']
  %s0 = inlined_call_operand.vmem [shape: f32[2,8,4], index: 0, kind: input, shape index: {}]
  %s1 = inlined_call_operand.hbm [shape: f32[4,32], index: 1, kind: input, shape index: {}]
  %s2 = inlined_call_operand.hbm [shape: f32[4,32], index: 2, kind: input, shape index: {}]
  %s3 = inlined_call_operand.vmem [shape: f32[1,32], index: 3, kind: input, shape index: {}]
  %s4 = inlined_call_operand.hbm [shape: f32[32,32], index: 4, kind: input, shape index: {}]
  %s5 = inlined_call_operand.vmem [shape: f32[1,32], index: 5, kind: input, shape index: {}]
  %s6 = inlined_call_operand.vmem [shape: f32[32,32], index: 6, kind: input, shape index: {}]
  %s7 = inlined_call_operand.hbm [shape: f32[8,32], index: 7, kind: input, shape index: {}]
  %s8 = inlined_call_operand.hbm [shape: f32[2,8,128], index: 8, kind: output, shape index: {}]
  %s9 = sld [smem:[#allocation0]]
  $region81: #{tpu_custom_call.1} parent=0
    _
  %s11 = ssub.s32 1, %s9
  %s12 = scalar_select 0, %s11, %s9
  $region1: #{tpu_custom_call.1} parent=0
    #allocation2 [shape = 'u8[2048]{0}', space=vmem, size = 0x800, scoped, tag = 'input window, operand 1, single buffered']
    #allocation3 [shape = 's32[2]{0}', space=sflag, size = 0x8, scoped, tag = 'scoped memory for tpu_custom_call.1']
    #allocation4 [shape = 's32[2]{0}', space=sflag, size = 0x8, scoped, tag = 'scoped memory for tpu_custom_call.1']
    #allocation5 [shape = 'u8[2048]{0}', space=vmem, size = 0x800, scoped, tag = 'input window, operand 2, single buffered']
    #allocation6 [shape = 's32[1]{0}', space=sflag, size = 0x4, scoped, tag = 'scoped memory for tpu_custom_call.1']
    #allocation7 [shape = 'u8[16384]{0}', space=vmem, size = 0x4000, scoped, tag = 'input window, operand 4, single buffered']
    #allocation8 [shape = 'u8[4096]{0}', space=vmem, size = 0x1000, scoped, tag = 'input window, operand 7, single buffered']
    #allocation9 [shape = 's32[1]{0}', space=sflag, size = 0x4, scoped, tag = 'scoped memory for tpu_custom_call.1']
    #allocation10 [shape = 'u8[8192]{0}', space=vmem, size = 0x2000, scoped, tag = 'output window, operand 0']
    %13 = vsyncpa [#allocation3], 0
    %14 = vsyncpa [#allocation6], 0
    %15 = vsyncpa [#allocation9], 0
    %16 = vsyncpa [#allocation4], 0
    %s17 = scalar_lea.sflag [#allocation4], 1
    %18 = vsyncpa %s17, 0
    loop: start=0, step=1, limit=4
    $region2: #{tpu_custom_call.1} parent=1 // loop_pre_header
      _
    $region3: #{tpu_custom_call.1} parent=1 // loop_header
      %s20 = sphi 0, %s24
      %p21 = scmp.ge.s32.totalorder %s20, 4
      %s27 = sphi 0, %s39
      %s28 = sphi 0, %s35
      %s29 = sphi 0, %s27
      %s30 = sphi 0, %s28
      %s31 = sphi 0, %s29
      %s32 = sphi 0, %s30
      %s42 = sphi 0, %s44
      %s45 = sphi 0, %s42
      %s46 = sphi 0, %s45
      %s62 = sphi 0, %s46
      %s68 = sphi 0, %s70
      %s71 = sphi 0, %s68
      %s72 = sphi 0, %s71
      %s88 = sphi 0, %s72
      %s92 = sphi 0, %s92
      %s94 = sphi 0, %s92
      %s95 = sphi 0, %s94
      %s109 = sphi 0, %s95
      %s113 = sphi 0, %s113
      %s115 = sphi 0, %s113
      %s116 = sphi 0, %s115
      %s130 = sphi 0, %s116
      %s134 = sphi 0, %s134
      %s136 = sphi 0, %s134
      %s137 = sphi 0, %s136
      %s151 = sphi 0, %s137
      %s155 = sphi 0, %s155
      %s157 = sphi 0, %s155
      %s158 = sphi 0, %s157
      %s172 = sphi 0, %s158
      %s176 = sphi 0, %s176
      %s178 = sphi 0, %s176
      %s179 = sphi 0, %s178
      %s193 = sphi 0, %s179
      %s197 = sphi 0, %s197
      %s199 = sphi 0, %s197
      %s200 = sphi 0, %s199
      %s214 = sphi 0, %s200
      %s222 = sphi 0, %s224
      %s225 = sphi 0, %s222
      %s226 = sphi 0, %s225
      %s242 = sphi 0, %s226
    $region4: #{tpu_custom_call.1} parent=1 // loop_header_branch
      %23 = sbr.rel (%p21) target = $region8
    $region5: #{tpu_custom_call.1} parent=1 // loop_body
      %s25 = ssub.s32 %s20, 1
      %s26 = ssub.s32 %s20, 2
      %s33 = sadd.s32 1, %s28
      %p34 = scmp.ge.s32.totalorder %s33, 1
      %s35 = scalar_select %p34, 0, %s33
      %s36 = sadd.s32 1, %s27
      %s37 = scalar_select %p34, %s36, %s27
      %p38 = scmp.ge.s32.totalorder %s37, 2
      %s39 = scalar_select %p38, 0, %s37
      %s40 = ssub.s32 %s27, %s39
      %p41 = scmp.eq.s32.totalorder %s40, 0
      %s43 = sadd.s32 %s42, 1
      %s44 = scalar_select %p41, %s42, %s43
      %p47 = pneg %p41
      %p48 = scmp.eq.s32.totalorder %s20, 1
      %p49 = por %p47, %p48
      %p50 = scmp.ne.s32.totalorder %s42, %s45
      %p51 = scmp.eq.s32.totalorder %s20, 0
      %p52 = por %p50, %p51
      %p53 = scmp.ne.s32.totalorder %s42, %s45
      %p54 = scmp.eq.s32.totalorder %s25, 1
      %p55 = por %p53, %p54
      %p56 = scmp.ne.s32.totalorder %s45, %s46
      %p57 = scmp.eq.s32.totalorder %s25, 0
      %p58 = por %p56, %p57
      %p59 = scmp.ne.s32.totalorder %s45, %s46
      %p60 = scmp.eq.s32.totalorder %s26, 1
      %p61 = por %p59, %p60
      %p63 = scmp.ne.s32.totalorder %s46, %s62
      %p64 = scmp.eq.s32.totalorder %s26, 0
      %p65 = por %p63, %p64
      %s66 = ssub.s32 %s28, %s35
      %p67 = scmp.eq.s32.totalorder %s66, 0
      %s69 = sadd.s32 %s68, 1
      %s70 = scalar_select %p67, %s68, %s69
      %p73 = pneg %p67
      %p74 = scmp.eq.s32.totalorder %s20, 1
      %p75 = por %p73, %p74
      %p76 = scmp.ne.s32.totalorder %s68, %s71
      %p77 = scmp.eq.s32.totalorder %s20, 0
      %p78 = por %p76, %p77
      %p79 = scmp.ne.s32.totalorder %s68, %s71
      %p80 = scmp.eq.s32.totalorder %s25, 1
      %p81 = por %p79, %p80
      %p82 = scmp.ne.s32.totalorder %s71, %s72
      %p83 = scmp.eq.s32.totalorder %s25, 0
      %p84 = por %p82, %p83
      %p85 = scmp.ne.s32.totalorder %s71, %s72
      %p86 = scmp.eq.s32.totalorder %s26, 1
      %p87 = por %p85, %p86
      %p89 = scmp.ne.s32.totalorder %s72, %s88
      %p90 = scmp.eq.s32.totalorder %s26, 0
      %p91 = por %p89, %p90
      %s93 = sadd.s32 %s92, 1
      %p96 = scmp.eq.s32.totalorder %s20, 1
      %p97 = scmp.ne.s32.totalorder %s92, %s94
      %p98 = scmp.eq.s32.totalorder %s20, 0
      %p99 = por %p97, %p98
      %p100 = scmp.ne.s32.totalorder %s92, %s94
      %p101 = scmp.eq.s32.totalorder %s25, 1
      %p102 = por %p100, %p101
      %p103 = scmp.ne.s32.totalorder %s94, %s95
      %p104 = scmp.eq.s32.totalorder %s25, 0
      %p105 = por %p103, %p104
      %p106 = scmp.ne.s32.totalorder %s94, %s95
      %p107 = scmp.eq.s32.totalorder %s26, 1
      %p108 = por %p106, %p107
      %p110 = scmp.ne.s32.totalorder %s95, %s109
      %p111 = scmp.eq.s32.totalorder %s26, 0
      %p112 = por %p110, %p111
      %s114 = sadd.s32 %s113, 1
      %p117 = scmp.eq.s32.totalorder %s20, 1
      %p118 = scmp.ne.s32.totalorder %s113, %s115
      %p119 = scmp.eq.s32.totalorder %s20, 0
      %p120 = por %p118, %p119
      %p121 = scmp.ne.s32.totalorder %s113, %s115
      %p122 = scmp.eq.s32.totalorder %s25, 1
      %p123 = por %p121, %p122
      %p124 = scmp.ne.s32.totalorder %s115, %s116
      %p125 = scmp.eq.s32.totalorder %s25, 0
      %p126 = por %p124, %p125
      %p127 = scmp.ne.s32.totalorder %s115, %s116
      %p128 = scmp.eq.s32.totalorder %s26, 1
      %p129 = por %p127, %p128
      %p131 = scmp.ne.s32.totalorder %s116, %s130
      %p132 = scmp.eq.s32.totalorder %s26, 0
      %p133 = por %p131, %p132
      %s135 = sadd.s32 %s134, 1
      %p138 = scmp.eq.s32.totalorder %s20, 1
      %p139 = scmp.ne.s32.totalorder %s134, %s136
      %p140 = scmp.eq.s32.totalorder %s20, 0
      %p141 = por %p139, %p140
      %p142 = scmp.ne.s32.totalorder %s134, %s136
      %p143 = scmp.eq.s32.totalorder %s25, 1
      %p144 = por %p142, %p143
      %p145 = scmp.ne.s32.totalorder %s136, %s137
      %p146 = scmp.eq.s32.totalorder %s25, 0
      %p147 = por %p145, %p146
      %p148 = scmp.ne.s32.totalorder %s136, %s137
      %p149 = scmp.eq.s32.totalorder %s26, 1
      %p150 = por %p148, %p149
      %p152 = scmp.ne.s32.totalorder %s137, %s151
      %p153 = scmp.eq.s32.totalorder %s26, 0
      %p154 = por %p152, %p153
      %s156 = sadd.s32 %s155, 1
      %p159 = scmp.eq.s32.totalorder %s20, 1
      %p160 = scmp.ne.s32.totalorder %s155, %s157
      %p161 = scmp.eq.s32.totalorder %s20, 0
      %p162 = por %p160, %p161
      %p163 = scmp.ne.s32.totalorder %s155, %s157
      %p164 = scmp.eq.s32.totalorder %s25, 1
      %p165 = por %p163, %p164
      %p166 = scmp.ne.s32.totalorder %s157, %s158
      %p167 = scmp.eq.s32.totalorder %s25, 0
      %p168 = por %p166, %p167
      %p169 = scmp.ne.s32.totalorder %s157, %s158
      %p170 = scmp.eq.s32.totalorder %s26, 1
      %p171 = por %p169, %p170
      %p173 = scmp.ne.s32.totalorder %s158, %s172
      %p174 = scmp.eq.s32.totalorder %s26, 0
      %p175 = por %p173, %p174
      %s177 = sadd.s32 %s176, 1
      %p180 = scmp.eq.s32.totalorder %s20, 1
      %p181 = scmp.ne.s32.totalorder %s176, %s178
      %p182 = scmp.eq.s32.totalorder %s20, 0
      %p183 = por %p181, %p182
      %p184 = scmp.ne.s32.totalorder %s176, %s178
      %p185 = scmp.eq.s32.totalorder %s25, 1
      %p186 = por %p184, %p185
      %p187 = scmp.ne.s32.totalorder %s178, %s179
      %p188 = scmp.eq.s32.totalorder %s25, 0
      %p189 = por %p187, %p188
      %p190 = scmp.ne.s32.totalorder %s178, %s179
      %p191 = scmp.eq.s32.totalorder %s26, 1
      %p192 = por %p190, %p191
      %p194 = scmp.ne.s32.totalorder %s179, %s193
      %p195 = scmp.eq.s32.totalorder %s26, 0
      %p196 = por %p194, %p195
      %s198 = sadd.s32 %s197, 1
      %p201 = scmp.eq.s32.totalorder %s20, 1
      %p202 = scmp.ne.s32.totalorder %s197, %s199
      %p203 = scmp.eq.s32.totalorder %s20, 0
      %p204 = por %p202, %p203
      %p205 = scmp.ne.s32.totalorder %s197, %s199
      %p206 = scmp.eq.s32.totalorder %s25, 1
      %p207 = por %p205, %p206
      %p208 = scmp.ne.s32.totalorder %s199, %s200
      %p209 = scmp.eq.s32.totalorder %s25, 0
      %p210 = por %p208, %p209
      %p211 = scmp.ne.s32.totalorder %s199, %s200
      %p212 = scmp.eq.s32.totalorder %s26, 1
      %p213 = por %p211, %p212
      %p215 = scmp.ne.s32.totalorder %s200, %s214
      %p216 = scmp.eq.s32.totalorder %s26, 0
      %p217 = por %p215, %p216
      %s218 = ssub.s32 %s27, %s39
      %s219 = ssub.s32 %s28, %s35
      %s220 = sor.u32 %s218, %s219
      %p221 = scmp.eq.s32.totalorder %s220, 0
      %s223 = sadd.s32 %s222, 1
      %s224 = scalar_select %p221, %s222, %s223
      %p227 = pneg %p221
      %p228 = scmp.eq.s32.totalorder %s20, 1
      %p229 = por %p227, %p228
      %p230 = scmp.ne.s32.totalorder %s222, %s225
      %p231 = scmp.eq.s32.totalorder %s20, 0
      %p232 = por %p230, %p231
      %p233 = scmp.ne.s32.totalorder %s222, %s225
      %p234 = scmp.eq.s32.totalorder %s25, 1
      %p235 = por %p233, %p234
      %p236 = scmp.ne.s32.totalorder %s225, %s226
      %p237 = scmp.eq.s32.totalorder %s25, 0
      %p238 = por %p236, %p237
      %p239 = scmp.ne.s32.totalorder %s225, %s226
      %p240 = scmp.eq.s32.totalorder %s26, 1
      %p241 = por %p239, %p240
      %p243 = scmp.ne.s32.totalorder %s226, %s242
      %p244 = scmp.eq.s32.totalorder %s26, 0
      %p245 = por %p243, %p244
      %p246 = scmp.le.s32.totalorder 1, %s20
      %p247 = scmp.lt.s32.totalorder %s20, 3
      %p248 = pnand %p246, %p247
      %p249 = pneg %p248
      // Predicated region
      $region9: #{tpu_custom_call.1} parent=5 // pred_check
        _
      $region10: #{tpu_custom_call.1} parent=5 // pred_check_branch
        %251 = sbr.rel (%p248) target = $region12
      $region11: #{tpu_custom_call.1} parent=5 // pred_region
        %s252 = ssub.s32 %s20, 1
        // Predicated region
        $region13: #{tpu_custom_call.1} parent=11 // pred_check
          %p253 = pneg %p84
        $region14: #{tpu_custom_call.1} parent=11 // pred_check_branch
          %255 = sbr.rel (%p253) target = $region16
        $region15: #{tpu_custom_call.1} parent=11 // pred_region
          %s257 = ssub.s32 64, 64
          %258 = vsyncadd [#allocation3], %s257
          %s259 = smul.addr %s30, 64
          %s260 = scalar_lea.hbm %s1, %s259
          %s262 = sshll.u32 [#allocation2], 4
          %s263 = int_to_ptr.vmem [resolvable:$true] %s262
          %265 = dma.hbm_to_vmem [thread:$0]  %s260, 64, %s263, [#allocation3]
        $region16: #{tpu_custom_call.1} parent=11 // pred_fallthru
          _
        // Predicated region
        $region17: #{tpu_custom_call.1} parent=11 // pred_check
          %p266 = pneg %p105
        $region18: #{tpu_custom_call.1} parent=11 // pred_check_branch
          %268 = sbr.rel (%p266) target = $region20
        $region19: #{tpu_custom_call.1} parent=11 // pred_region
          %s270 = ssub.s32 64, 64
          %271 = vsyncadd [#allocation6], %s270
          %s273 = sshll.u32 [#allocation5], 4
          %s274 = int_to_ptr.vmem [resolvable:$true] %s273
          %276 = dma.hbm_to_vmem [thread:$0]  %s2, 64, %s274, [#allocation6]
        $region20: #{tpu_custom_call.1} parent=11 // pred_fallthru
          _
        // Predicated region
        $region21: #{tpu_custom_call.1} parent=11 // pred_check
          %p277 = pneg %p126
        $region22: #{tpu_custom_call.1} parent=11 // pred_check_branch
          %279 = sbr.rel (%p277) target = $region24
        $region23: #{tpu_custom_call.1} parent=11 // pred_region
          _
        $region24: #{tpu_custom_call.1} parent=11 // pred_fallthru
          _
        // Predicated region
        $region25: #{tpu_custom_call.1} parent=11 // pred_check
          %p280 = pneg %p147
        $region26: #{tpu_custom_call.1} parent=11 // pred_check_branch
          %282 = sbr.rel (%p280) target = $region28
        $region27: #{tpu_custom_call.1} parent=11 // pred_region
          %s284 = ssub.s32 512, 512
          %285 = vsyncadd [#allocation6], %s284
          %s286 = sshll.u32 [#allocation7], 4
          %s287 = int_to_ptr.vmem [resolvable:$true] %s286
          %292 = dma.hbm_to_vmem [thread:$0]  %s4, 512, %s287, [#allocation6], 128, 128, 8
        $region28: #{tpu_custom_call.1} parent=11 // pred_fallthru
          _
        // Predicated region
        $region29: #{tpu_custom_call.1} parent=11 // pred_check
          %p293 = pneg %p168
        $region30: #{tpu_custom_call.1} parent=11 // pred_check_branch
          %295 = sbr.rel (%p293) target = $region32
        $region31: #{tpu_custom_call.1} parent=11 // pred_region
          _
        $region32: #{tpu_custom_call.1} parent=11 // pred_fallthru
          _
        // Predicated region
        $region33: #{tpu_custom_call.1} parent=11 // pred_check
          %p296 = pneg %p189
        $region34: #{tpu_custom_call.1} parent=11 // pred_check_branch
          %298 = sbr.rel (%p296) target = $region36
        $region35: #{tpu_custom_call.1} parent=11 // pred_region
          _
        $region36: #{tpu_custom_call.1} parent=11 // pred_fallthru
          _
        // Predicated region
        $region37: #{tpu_custom_call.1} parent=11 // pred_check
          %p299 = pneg %p210
        $region38: #{tpu_custom_call.1} parent=11 // pred_check_branch
          %301 = sbr.rel (%p299) target = $region40
        $region39: #{tpu_custom_call.1} parent=11 // pred_region
          %s303 = ssub.s32 128, 128
          %304 = vsyncadd [#allocation9], %s303
          %s306 = sshll.u32 [#allocation8], 4
          %s307 = int_to_ptr.vmem [resolvable:$true] %s306
          %309 = dma.hbm_to_vmem [thread:$0]  %s7, 128, %s307, [#allocation9]
        $region40: #{tpu_custom_call.1} parent=11 // pred_fallthru
          _
      $region12: #{tpu_custom_call.1} parent=5 // pred_fallthru
        _
      %p310 = scmp.lt.s32.totalorder %s20, 2
      // Predicated region
      $region41: #{tpu_custom_call.1} parent=5 // pred_check
        %p311 = pneg %p310
      $region42: #{tpu_custom_call.1} parent=5 // pred_check_branch
        %313 = sbr.rel (%p311) target = $region44
      $region43: #{tpu_custom_call.1} parent=5 // pred_region
        // Predicated region
        $region45: #{tpu_custom_call.1} parent=43 // pred_check
          %p314 = pneg %p52
        $region46: #{tpu_custom_call.1} parent=43 // pred_check_branch
          %316 = sbr.rel (%p314) target = $region48
        $region47: #{tpu_custom_call.1} parent=43 // pred_region
          %p317 = scmp.lt.s32.totalorder %s27, 1
          %s318 = scalar_select %p317, %s27, 1
          %s319 = smul.addr %s318, 8
          %s320 = scalar_lea.vmem %s0, %s319
        $region48: #{tpu_custom_call.1} parent=43 // pred_fallthru
          _
      $region44: #{tpu_custom_call.1} parent=5 // pred_fallthru
        _
      %p321 = scmp.le.s32.totalorder 1, %s20
      %p322 = scmp.lt.s32.totalorder %s20, 3
      %p323 = pnand %p321, %p322
      %p324 = pneg %p323
      // Predicated region
      $region49: #{tpu_custom_call.1} parent=5 // pred_check
        _
      $region50: #{tpu_custom_call.1} parent=5 // pred_check_branch
        %326 = sbr.rel (%p323) target = $region52
      $region51: #{tpu_custom_call.1} parent=5 // pred_region
        %s327 = ssub.s32 %s20, 1
        // Predicated region
        $region53: #{tpu_custom_call.1} parent=51 // pred_check
          %p328 = pneg %p84
        $region54: #{tpu_custom_call.1} parent=51 // pred_check_branch
          %330 = sbr.rel (%p328) target = $region56
        $region55: #{tpu_custom_call.1} parent=51 // pred_region
          %331 = dma.done [#allocation3], 64
        $region56: #{tpu_custom_call.1} parent=51 // pred_fallthru
          _
        // Predicated region
        $region57: #{tpu_custom_call.1} parent=51 // pred_check
          %p332 = pneg %p105
        $region58: #{tpu_custom_call.1} parent=51 // pred_check_branch
          %334 = sbr.rel (%p332) target = $region60
        $region59: #{tpu_custom_call.1} parent=51 // pred_region
          %335 = dma.done [#allocation6], 64
        $region60: #{tpu_custom_call.1} parent=51 // pred_fallthru
          _
        // Predicated region
        $region61: #{tpu_custom_call.1} parent=51 // pred_check
          %p336 = pneg %p147
        $region62: #{tpu_custom_call.1} parent=51 // pred_check_branch
          %338 = sbr.rel (%p336) target = $region64
        $region63: #{tpu_custom_call.1} parent=51 // pred_region
          %339 = dma.done [#allocation6], 512
        $region64: #{tpu_custom_call.1} parent=51 // pred_fallthru
          _
        // Predicated region
        $region65: #{tpu_custom_call.1} parent=51 // pred_check
          %p340 = pneg %p210
        $region66: #{tpu_custom_call.1} parent=51 // pred_check_branch
          %342 = sbr.rel (%p340) target = $region68
        $region67: #{tpu_custom_call.1} parent=51 // pred_region
          %343 = dma.done [#allocation9], 128
        $region68: #{tpu_custom_call.1} parent=51 // pred_fallthru
          _
        %p344 = scmp.lt.s32.totalorder %s29, 1
        %s345 = scalar_select %p344, %s29, 1
        %s346 = smul.addr %s345, 8
        %s347 = scalar_lea.vmem %s0, %s346
        %p348 = pneg %p58
        %p349 = pneg %p55
        %p350 = pneg %p84
        %p351 = pneg %p81
        %p352 = pneg %p105
        %p353 = pneg %p102
        %p354 = pneg %p126
        %p355 = pneg %p123
        %p356 = pneg %p147
        %p357 = pneg %p144
        %p358 = pneg %p168
        %p359 = pneg %p165
        %p360 = pneg %p189
        %p361 = pneg %p186
        %p362 = pneg %p210
        %p363 = pneg %p207
        %p364 = pneg %p238
        %p365 = pneg %p235
        %s366 = sand.u32 %s225, 1
        %s367 = scalar_lea.sflag [#allocation4], %s366
        %s368 = sand.u32 %s225, 1
        %s369 = smul.addr %s368, 8
        %s370 = scalar_lea.vmem [#allocation10], %s369
        %p371 = scmp.lt.s32.totalorder %s29, 1
        %s372 = scalar_select %p371, %s29, 1
        %s373 = smul.addr %s372, 8
        %s374 = scalar_lea.vmem %s0, %s373
        %v375 = vld [vmem:[%s374] sm:$0xff]
        %v376 = vld [vmem:[#allocation5] sm:$0xf]
        %v377 = vld [vmem:[%s3] sm:$0x1]
        %v379 = vlaneseq
        %v380 = vshrl.u32 %v379, 7
        %v381 = vsub.s32 0, %v380
        %v382 = vrot.slane %v377, %v381
        %vm384 = vcmask 31744
        %v386 = vsel %vm384, %v375, 0
        %vm388 = vcmask 1043456
        %v390 = vsel %vm388, %v376, 0
        %392 = vmatprep.subr.mxu0 0.0
        %393 = vmatpush1.msra.mxu0 0.0
        %394 = vmatprep.subr.mxu0 0.0
        %395 = vmatpush1.msra.mxu0 0.0
        %396 = vmatprep.subr.mxu0 0.0
        %397 = vmatpush1.msra.mxu0 0.0
        %398 = vmatprep.subr.mxu0 0.0
        %399 = vmatpush1.msra.mxu0 0.0
        %400 = vmatprep.subr.mxu0 0.0
        %401 = vmatpush1.msra.mxu0 0.0
        %402 = vmatprep.subr.mxu0 0.0
        %403 = vmatpush1.msra.mxu0 0.0
        %404 = vmatprep.subr.mxu0 0.0
        %405 = vmatpush1.msra.mxu0 0.0
        %406 = vmatprep.subr.mxu0 0.0
        %407 = vmatpush1.msra.mxu0 0.0
        %408 = vmatprep.subr.mxu0 0.0
        %409 = vmatpush1.msra.mxu0 0.0
        %410 = vmatprep.subr.mxu0 0.0
        %411 = vmatpush1.msra.mxu0 0.0
        %412 = vmatprep.subr.mxu0 0.0
        %413 = vmatpush1.msra.mxu0 0.0
        %414 = vmatprep.subr.mxu0 0.0
        %415 = vmatpush1.msra.mxu0 0.0
        %416 = vmatprep.subr.mxu0 0.0
        %417 = vmatpush1.msra.mxu0 0.0
        %418 = vmatprep.subr.mxu0 0.0
        %419 = vmatpush1.msra.mxu0 0.0
        %420 = vmatprep.subr.mxu0 0.0
        %421 = vmatpush1.msra.mxu0 0.0
        %422 = vmatprep.subr.mxu0 0.0
        %423 = vmatpush1.msra.mxu0 %v390
        %424 = vmatprep.subr.mxu0 0.0
        %425 = vmatpush2.msra.mxu0 0.0
        %426 = vmatprep.subr.mxu0 0.0
        %427 = vmatpush2.msra.mxu0 0.0
        %428 = vmatprep.subr.mxu0 0.0
        %429 = vmatpush2.msra.mxu0 0.0
        %430 = vmatprep.subr.mxu0 0.0
        %431 = vmatpush2.msra.mxu0 0.0
        %432 = vmatprep.subr.mxu0 0.0
        %433 = vmatpush2.msra.mxu0 0.0
        %434 = vmatprep.subr.mxu0 0.0
        %435 = vmatpush2.msra.mxu0 0.0
        %436 = vmatprep.subr.mxu0 0.0
        %437 = vmatpush2.msra.mxu0 0.0
        %438 = vmatprep.subr.mxu0 0.0
        %439 = vmatpush2.msra.mxu0 0.0
        %440 = vmatprep.subr.mxu0 0.0
        %441 = vmatpush2.msra.mxu0 0.0
        %442 = vmatprep.subr.mxu0 0.0
        %443 = vmatpush2.msra.mxu0 0.0
        %444 = vmatprep.subr.mxu0 0.0
        %445 = vmatpush2.msra.mxu0 0.0
        %446 = vmatprep.subr.mxu0 0.0
        %447 = vmatpush2.msra.mxu0 0.0
        %448 = vmatprep.subr.mxu0 0.0
        %449 = vmatpush2.msra.mxu0 0.0
        %450 = vmatprep.subr.mxu0 0.0
        %451 = vmatpush2.msra.mxu0 0.0
        %452 = vmatprep.subr.mxu0 0.0
        %453 = vmatpush2.msra.mxu0 0.0
        %454 = vmatprep.subr.mxu0 0.0
        %455 = vmatpush2.msra.mxu0 0.0
        %456 = vmatprep.mubr.f32.mxu0 0.0
        %457 = vmatmul.mubr.f32.gmra.mxu0 %v386
        %v458 = vpop.f32.mrf.mxu0
        %v459 = vadd.f32 %v382, %v458
        %v460 = vpop.f32.mrf.mxu0
        %461 = vdwg.mxu0
        %v462 = vld [vmem:[#allocation2] sm:$0xf]
        %v465 = vunpack.c.l.s4 1966171168
        %v466 = vunpack.c.0.s8 %v465
        %v467 = vlaneseq
        %v468 = vshrl.u32 %v467, 7
        %v469 = vsub.s32 %v466, %v468
        %v470 = vrot.slane %v462, %v469
        %v471 = vcombine.high %v470, %v470
        %v473 = vunpack.c.l.s4 1966171168
        %v474 = vunpack.c.0.s8 %v473
        %v475 = vlaneseq
        %v476 = vshrl.u32 %v475, 7
        %v477 = vsub.s32 %v474, %v476
        %v478 = vrot.slane %v470, %v477
        %v480 = vunpack.c.l.s4 1966171168
        %v481 = vunpack.c.0.s8 %v480
        %v482 = vlaneseq
        %v483 = vshrl.u32 %v482, 7
        %v484 = vsub.s32 %v481, %v483
        %v485 = vrot.slane %v471, %v484
        %v486 = vcombine.high %v478, %v478
        %v487 = vcombine.high %v485, %v485
        %v488 = vlaneseq
        %v489 = vshrl.u32 %v488, 7
        %v490 = vsub.s32 0, %v489
        %v491 = vrot.slane %v478, %v490
        %v492 = vlaneseq
        %v493 = vshrl.u32 %v492, 7
        %v494 = vsub.s32 0, %v493
        %v495 = vrot.slane %v485, %v494
        %v496 = vlaneseq
        %v497 = vshrl.u32 %v496, 7
        %v498 = vsub.s32 0, %v497
        %v499 = vrot.slane %v486, %v498
        %v500 = vlaneseq
        %v501 = vshrl.u32 %v500, 7
        %v502 = vsub.s32 0, %v501
        %v503 = vrot.slane %v487, %v502
        %v508 = vadd.f32 %v459, %v491
        %v509 = vadd.f32 %v459, %v495
        %v510 = vadd.f32 %v459, %v499
        %v511 = vadd.f32 %v459, %v503
        %vm512 = vcmp.ge.f32.partialorder %v508, 0.0
        %vm513 = vcmp.ge.f32.partialorder %v509, 0.0
        %vm514 = vcmp.ge.f32.partialorder %v510, 0.0
        %vm515 = vcmp.ge.f32.partialorder %v511, 0.0
        %v516 = vmul.f32 %v508, 0.01
        %v517 = vmul.f32 %v509, 0.01
        %v518 = vmul.f32 %v510, 0.01
        %v519 = vmul.f32 %v511, 0.01
        %v520 = vsel %vm512, %v508, %v516
        %v521 = vsel %vm513, %v509, %v517
        %v522 = vsel %vm514, %v510, %v518
        %v523 = vsel %vm515, %v511, %v519
        %v524 = vld [vmem:[#allocation7] sm:$0xff]
        %v525 = vld [vmem:[#allocation7 + $0x8] sm:$0xff]
        %v526 = vld [vmem:[#allocation7 + $0x10] sm:$0xff]
        %v527 = vld [vmem:[#allocation7 + $0x18] sm:$0xff]
        %v528 = vld [vmem:[%s5] sm:$0x1]
        %v530 = vlaneseq
        %v531 = vshrl.u32 %v530, 7
        %v532 = vsub.s32 0, %v531
        %v533 = vrot.slane %v528, %v532
        %vm535 = vcmask 261120
        %v537 = vsel %vm535, %v520, 0
        %v540 = vsel %vm535, %v521, 0
        %v543 = vsel %vm535, %v522, 0
        %v546 = vsel %vm535, %v523, 0
        %548 = vmatprep.subr.mxu0 0.0
        %549 = vmatpush1.msra.mxu0 0.0
        %550 = vmatprep.subr.mxu0 0.0
        %551 = vmatpush1.msra.mxu0 0.0
        %552 = vmatprep.subr.mxu0 0.0
        %553 = vmatpush1.msra.mxu0 0.0
        %554 = vmatprep.subr.mxu0 0.0
        %555 = vmatpush1.msra.mxu0 0.0
        %556 = vmatprep.subr.mxu0 0.0
        %557 = vmatpush1.msra.mxu0 0.0
        %558 = vmatprep.subr.mxu0 0.0
        %559 = vmatpush1.msra.mxu0 0.0
        %560 = vmatprep.subr.mxu0 0.0
        %561 = vmatpush1.msra.mxu0 0.0
        %562 = vmatprep.subr.mxu0 0.0
        %563 = vmatpush1.msra.mxu0 0.0
        %564 = vmatprep.subr.mxu0 0.0
        %565 = vmatpush1.msra.mxu0 0.0
        %566 = vmatprep.subr.mxu0 0.0
        %567 = vmatpush1.msra.mxu0 0.0
        %568 = vmatprep.subr.mxu0 0.0
        %569 = vmatpush1.msra.mxu0 0.0
        %570 = vmatprep.subr.mxu0 0.0
        %571 = vmatpush1.msra.mxu0 0.0
        %572 = vmatprep.subr.mxu0 0.0
        %573 = vmatpush1.msra.mxu0 %v527
        %574 = vmatprep.subr.mxu0 0.0
        %575 = vmatpush1.msra.mxu0 %v526
        %576 = vmatprep.subr.mxu0 0.0
        %577 = vmatpush1.msra.mxu0 %v525
        %578 = vmatprep.subr.mxu0 0.0
        %579 = vmatpush1.msra.mxu0 %v524
        %580 = vmatprep.subr.mxu0 0.0
        %581 = vmatpush2.msra.mxu0 0.0
        %582 = vmatprep.subr.mxu0 0.0
        %583 = vmatpush2.msra.mxu0 0.0
        %584 = vmatprep.subr.mxu0 0.0
        %585 = vmatpush2.msra.mxu0 0.0
        %586 = vmatprep.subr.mxu0 0.0
        %587 = vmatpush2.msra.mxu0 0.0
        %588 = vmatprep.subr.mxu0 0.0
        %589 = vmatpush2.msra.mxu0 0.0
        %590 = vmatprep.subr.mxu0 0.0
        %591 = vmatpush2.msra.mxu0 0.0
        %592 = vmatprep.subr.mxu0 0.0
        %593 = vmatpush2.msra.mxu0 0.0
        %594 = vmatprep.subr.mxu0 0.0
        %595 = vmatpush2.msra.mxu0 0.0
        %596 = vmatprep.subr.mxu0 0.0
        %597 = vmatpush2.msra.mxu0 0.0
        %598 = vmatprep.subr.mxu0 0.0
        %599 = vmatpush2.msra.mxu0 0.0
        %600 = vmatprep.subr.mxu0 0.0
        %601 = vmatpush2.msra.mxu0 0.0
        %602 = vmatprep.subr.mxu0 0.0
        %603 = vmatpush2.msra.mxu0 0.0
        %604 = vmatprep.subr.mxu0 0.0
        %605 = vmatpush2.msra.mxu0 0.0
        %606 = vmatprep.subr.mxu0 0.0
        %607 = vmatpush2.msra.mxu0 0.0
        %608 = vmatprep.subr.mxu0 0.0
        %609 = vmatpush2.msra.mxu0 0.0
        %610 = vmatprep.subr.mxu0 0.0
        %611 = vmatpush2.msra.mxu0 0.0
        %612 = vmatprep.mubr.f32.mxu0 0.0
        %613 = vmatmul.mubr.f32.gmra.mxu0 %v537
        %v614 = vpop.f32.mrf.mxu0
        %v615 = vadd.f32 %v533, %v614
        %v616 = vpop.f32.mrf.mxu0
        %617 = vmatprep.mubr.f32.mxu0 0.0
        %618 = vmatmul.mubr.f32.gmra.mxu0 %v540
        %v619 = vpop.f32.mrf.mxu0
        %v620 = vadd.f32 %v533, %v619
        %v621 = vpop.f32.mrf.mxu0
        %622 = vmatprep.mubr.f32.mxu0 0.0
        %623 = vmatmul.mubr.f32.gmra.mxu0 %v543
        %v624 = vpop.f32.mrf.mxu0
        %v625 = vadd.f32 %v533, %v624
        %v626 = vpop.f32.mrf.mxu0
        %627 = vmatprep.mubr.f32.mxu0 0.0
        %628 = vmatmul.mubr.f32.gmra.mxu0 %v546
        %v629 = vpop.f32.mrf.mxu0
        %v630 = vadd.f32 %v533, %v629
        %v631 = vpop.f32.mrf.mxu0
        %632 = vdwg.mxu0
        %v633 = vmax.f32 %v615, 0.0
        %v634 = vmax.f32 %v620, 0.0
        %v635 = vmax.f32 %v625, 0.0
        %v636 = vmax.f32 %v630, 0.0
        %v637 = vld [vmem:[%s6] sm:$0xff]
        %v638 = vld [vmem:[%s6 + $0x8] sm:$0xff]
        %v639 = vld [vmem:[%s6 + $0x10] sm:$0xff]
        %v640 = vld [vmem:[%s6 + $0x18] sm:$0xff]
        %v642 = vsel %vm535, %v633, 0
        %v645 = vsel %vm535, %v634, 0
        %v648 = vsel %vm535, %v635, 0
        %v651 = vsel %vm535, %v636, 0
        %653 = vmatprep.subr.mxu0 0.0
        %654 = vmatpush1.msra.mxu0 0.0
        %655 = vmatprep.subr.mxu0 0.0
        %656 = vmatpush1.msra.mxu0 0.0
        %657 = vmatprep.subr.mxu0 0.0
        %658 = vmatpush1.msra.mxu0 0.0
        %659 = vmatprep.subr.mxu0 0.0
        %660 = vmatpush1.msra.mxu0 0.0
        %661 = vmatprep.subr.mxu0 0.0
        %662 = vmatpush1.msra.mxu0 0.0
        %663 = vmatprep.subr.mxu0 0.0
        %664 = vmatpush1.msra.mxu0 0.0
        %665 = vmatprep.subr.mxu0 0.0
        %666 = vmatpush1.msra.mxu0 0.0
        %667 = vmatprep.subr.mxu0 0.0
        %668 = vmatpush1.msra.mxu0 0.0
        %669 = vmatprep.subr.mxu0 0.0
        %670 = vmatpush1.msra.mxu0 0.0
        %671 = vmatprep.subr.mxu0 0.0
        %672 = vmatpush1.msra.mxu0 0.0
        %673 = vmatprep.subr.mxu0 0.0
        %674 = vmatpush1.msra.mxu0 0.0
        %675 = vmatprep.subr.mxu0 0.0
        %676 = vmatpush1.msra.mxu0 0.0
        %677 = vmatprep.subr.mxu0 0.0
        %678 = vmatpush1.msra.mxu0 %v640
        %679 = vmatprep.subr.mxu0 0.0
        %680 = vmatpush1.msra.mxu0 %v639
        %681 = vmatprep.subr.mxu0 0.0
        %682 = vmatpush1.msra.mxu0 %v638
        %683 = vmatprep.subr.mxu0 0.0
        %684 = vmatpush1.msra.mxu0 %v637
        %685 = vmatprep.subr.mxu0 0.0
        %686 = vmatpush2.msra.mxu0 0.0
        %687 = vmatprep.subr.mxu0 0.0
        %688 = vmatpush2.msra.mxu0 0.0
        %689 = vmatprep.subr.mxu0 0.0
        %690 = vmatpush2.msra.mxu0 0.0
        %691 = vmatprep.subr.mxu0 0.0
        %692 = vmatpush2.msra.mxu0 0.0
        %693 = vmatprep.subr.mxu0 0.0
        %694 = vmatpush2.msra.mxu0 0.0
        %695 = vmatprep.subr.mxu0 0.0
        %696 = vmatpush2.msra.mxu0 0.0
        %697 = vmatprep.subr.mxu0 0.0
        %698 = vmatpush2.msra.mxu0 0.0
        %699 = vmatprep.subr.mxu0 0.0
        %700 = vmatpush2.msra.mxu0 0.0
        %701 = vmatprep.subr.mxu0 0.0
        %702 = vmatpush2.msra.mxu0 0.0
        %703 = vmatprep.subr.mxu0 0.0
        %704 = vmatpush2.msra.mxu0 0.0
        %705 = vmatprep.subr.mxu0 0.0
        %706 = vmatpush2.msra.mxu0 0.0
        %707 = vmatprep.subr.mxu0 0.0
        %708 = vmatpush2.msra.mxu0 0.0
        %709 = vmatprep.subr.mxu0 0.0
        %710 = vmatpush2.msra.mxu0 0.0
        %711 = vmatprep.subr.mxu0 0.0
        %712 = vmatpush2.msra.mxu0 0.0
        %713 = vmatprep.subr.mxu0 0.0
        %714 = vmatpush2.msra.mxu0 0.0
        %715 = vmatprep.subr.mxu0 0.0
        %716 = vmatpush2.msra.mxu0 0.0
        %717 = vmatprep.mubr.f32.mxu0 0.0
        %718 = vmatmul.mubr.f32.gmra.mxu0 %v642
        %v719 = vpop.f32.mrf.mxu0
        %v720 = vadd.f32 0.0, %v719
        %v721 = vpop.f32.mrf.mxu0
        %722 = vmatprep.mubr.f32.mxu0 0.0
        %723 = vmatmul.mubr.f32.gmra.mxu0 %v645
        %v724 = vpop.f32.mrf.mxu0
        %v725 = vadd.f32 0.0, %v724
        %v726 = vpop.f32.mrf.mxu0
        %727 = vmatprep.mubr.f32.mxu0 0.0
        %728 = vmatmul.mubr.f32.gmra.mxu0 %v648
        %v729 = vpop.f32.mrf.mxu0
        %v730 = vadd.f32 0.0, %v729
        %v731 = vpop.f32.mrf.mxu0
        %732 = vmatprep.mubr.f32.mxu0 0.0
        %733 = vmatmul.mubr.f32.gmra.mxu0 %v651
        %v734 = vpop.f32.mrf.mxu0
        %v735 = vadd.f32 0.0, %v734
        %v736 = vpop.f32.mrf.mxu0
        %737 = vdwg.mxu0
        %v738 = vld [vmem:[#allocation8] sm:$0xff]
        %v739 = vadd.f32 %v720, %v738
        %740 = vst.msk [vmem:[%s370] sm:$0xff] %vm535, %v739
        %v741 = vld [vmem:[#allocation8] sm:$0xff]
        %v742 = vadd.f32 %v725, %v741
        %744 = vrot.lane.b32.xlu0 %v742, 32
        %v745 = vpop.permute.xlu0 %744
        %vm747 = vcmask 523520
        %748 = vst.msk [vmem:[%s370] sm:$0xff] %vm747, %v745
        %v749 = vld [vmem:[#allocation8] sm:$0xff]
        %v750 = vadd.f32 %v730, %v749
        %752 = vrot.lane.b32.xlu0 %v750, 64
        %v753 = vpop.permute.xlu0 %752
        %vm755 = vcmask 785920
        %756 = vst.msk [vmem:[%s370] sm:$0xff] %vm755, %v753
        %v757 = vld [vmem:[#allocation8] sm:$0xff]
        %v758 = vadd.f32 %v735, %v757
        %760 = vrot.lane.b32.xlu0 %v758, 96
        %v761 = vpop.permute.xlu0 %760
        %vm763 = vcmask 1048320
        %764 = vst.msk [vmem:[%s370] sm:$0xff] %vm763, %v761
        %s765 = sand.u32 %s225, 1
        %s766 = scalar_lea.sflag [#allocation4], %s765
        %s767 = sand.u32 %s225, 1
        %s768 = smul.addr %s767, 8
        %s769 = scalar_lea.vmem [#allocation10], %s768
        // Predicated region
        $region69: #{tpu_custom_call.1} parent=51 // pred_check
          %p770 = pneg %p235
        $region70: #{tpu_custom_call.1} parent=51 // pred_check_branch
          %772 = sbr.rel (%p770) target = $region72
        $region71: #{tpu_custom_call.1} parent=51 // pred_region
          %s774 = ssub.s32 128, 128
          %775 = vsyncadd %s766, %s774
          %s776 = sadd.s32 %s30, %s29
          %s777 = smul.addr %s776, 128
          %s778 = scalar_lea.hbm %s8, %s777
          %s780 = sshll.u32 %s769, 4
          %s781 = int_to_ptr.vmem [resolvable:$true] %s780
          %783 = dma.vmem_to_hbm [thread:$0]  %s781, 128, %s778, %s766
        $region72: #{tpu_custom_call.1} parent=51 // pred_fallthru
          _
      $region52: #{tpu_custom_call.1} parent=5 // pred_fallthru
        _
      %p784 = scmp.le.s32.totalorder 2, %s20
      // Predicated region
      $region73: #{tpu_custom_call.1} parent=5 // pred_check
        %p785 = pneg %p784
      $region74: #{tpu_custom_call.1} parent=5 // pred_check_branch
        %787 = sbr.rel (%p785) target = $region76
      $region75: #{tpu_custom_call.1} parent=5 // pred_region
        %s788 = ssub.s32 %s20, 2
        // Predicated region
        $region77: #{tpu_custom_call.1} parent=75 // pred_check
          %p789 = pneg %p241
        $region78: #{tpu_custom_call.1} parent=75 // pred_check_branch
          %791 = sbr.rel (%p789) target = $region80
        $region79: #{tpu_custom_call.1} parent=75 // pred_region
          %s792 = sand.u32 %s226, 1
          %s793 = scalar_lea.sflag [#allocation4], %s792
          %s794 = sand.u32 %s226, 1
          %s795 = smul.addr %s794, 8
          %s796 = scalar_lea.vmem [#allocation10], %s795
          %797 = dma.done %s793, 128
        $region80: #{tpu_custom_call.1} parent=75 // pred_fallthru
          _
      $region76: #{tpu_custom_call.1} parent=5 // pred_fallthru
        _
    $region6: #{tpu_custom_call.1} parent=1 // loop_footer
      %s24 = sadd.s32 1, %s20
    $region7: #{tpu_custom_call.1} parent=1 // loop_footer_branch
      %19 = sbr.rel target = $region3
    $region8: #{tpu_custom_call.1} parent=1 // loop_exit
      _
    %798 = vsyncpa [#allocation3], 1
    %s799 = scalar_lea.sflag [#allocation3], 1
    %800 = vsyncpa %s799, 1
    %801 = vsyncpa [#allocation6], 1
    %802 = vsyncpa [#allocation9], 1
    %803 = vsyncpa [#allocation4], 1
    %s804 = scalar_lea.sflag [#allocation4], 1
    %805 = vsyncpa %s804, 1

</llo_original>
